<compile_context>
chip_gen: v7x
topology: tpu7x:2x2x1
jax: 0.10.0
libtpu: 0.0.40
codegen_flags: <defaults>
</compile_context>

<pallas_src>
import jax
import jax.numpy as jnp
from jax.experimental import pallas as pl
from jax.experimental.pallas import tpu as pltpu


def _linear_model_kernel(x_ref, w1_ref, b1_ref, w2_ref, b2_ref,
                         w3_ref, b3_ref, w4_ref, b4_ref, o_ref):
    x = x_ref[...]                                                    # (TM, Ni)

    # layer1: Linear(Ni, Nh)
    h = jnp.dot(x, w1_ref[...], preferred_element_type=jnp.float32) + b1_ref[...]

    # h = h + relu(layer2(h))
    h = h + jnp.maximum(
        jnp.dot(h, w2_ref[...], preferred_element_type=jnp.float32) + b2_ref[...],
        0.0)

    # h = h + relu(layer3(h))
    h = h + jnp.maximum(
        jnp.dot(h, w3_ref[...], preferred_element_type=jnp.float32) + b3_ref[...],
        0.0)

    # y = relu(layer4(h))
    o_ref[...] = jnp.maximum(
        jnp.dot(h, w4_ref[...], preferred_element_type=jnp.float32) + b4_ref[...],
        0.0)                                                          # (TM, No)


def linear_model(x, params, *, tm=32):
    """x: (B, Ni) float32. params: weights (Cin, Cout), biases (1, Cout)."""
    B, Ni = x.shape
    w1, b1 = params["w1"], params["b1"]   # (Ni, Nh), (1, Nh)
    w2, b2 = params["w2"], params["b2"]   # (Nh, Nh), (1, Nh)
    w3, b3 = params["w3"], params["b3"]   # (Nh, Nh), (1, Nh)
    w4, b4 = params["w4"], params["b4"]   # (Nh, No), (1, No)
    No = w4.shape[1]

    assert B % tm == 0 and tm % 8 == 0, (B, tm)

    # Weights / biases: full-array blocks with a constant block index — loaded
    # once and held in VMEM for the whole grid.
    const = lambda a: pl.BlockSpec(a.shape, lambda i: (0, 0))

    return pl.pallas_call(
        _linear_model_kernel,
        out_shape=jax.ShapeDtypeStruct((B, No), jnp.float32),
        grid_spec=pltpu.PrefetchScalarGridSpec(
            num_scalar_prefetch=0,
            grid=(B // tm,),
            in_specs=[
                pl.BlockSpec((tm, Ni), lambda i: (i, 0)),
                const(w1), const(b1),
                const(w2), const(b2),
                const(w3), const(b3),
                const(w4), const(b4),
            ],
            out_specs=pl.BlockSpec((tm, No), lambda i: (i, 0)),
        ),
        compiler_params=pltpu.CompilerParams(
            dimension_semantics=("parallel",),
            vmem_limit_bytes=32 << 20,
        ),
    )(x, w1, b1, w2, b2, w3, b3, w4, b4)


def _reference(x, params):
    """Pure-JAX reference matching the PyTorch forward."""
    h = x @ params["w1"] + params["b1"]
    h = h + jax.nn.relu(h @ params["w2"] + params["b2"])
    h = h + jax.nn.relu(h @ params["w3"] + params["b3"])
    return jax.nn.relu(h @ params["w4"] + params["b4"])


def _init_params(key, Ni, Nh, No):
    """Deterministic PyTorch-like init: uniform(-1/sqrt(fan_in), 1/sqrt(fan_in))."""
    ks = jax.random.split(key, 8)

    def lin(kw, kb, cin, cout):
        bound = 1.0 / jnp.sqrt(jnp.float32(cin))
        w = jax.random.uniform(kw, (cin, cout), jnp.float32, -bound, bound)
        b = jax.random.uniform(kb, (1, cout), jnp.float32, -bound, bound)
        return w, b

    w1, b1 = lin(ks[0], ks[1], Ni, Nh)
    w2, b2 = lin(ks[2], ks[3], Nh, Nh)
    w3, b3 = lin(ks[4], ks[5], Nh, Nh)
    w4, b4 = lin(ks[6], ks[7], Nh, No)
    return {"w1": w1, "b1": b1, "w2": w2, "b2": b2,
            "w3": w3, "b3": b3, "w4": w4, "b4": b4}


if __name__ == "__main__":
    key = jax.random.PRNGKey(0)
    k_x, k_p = jax.random.split(key)

    # Small shapes consistent with the module: batch=64, Ni=32, Nh=64, No=32.
    B, Ni, Nh, No = 64, 32, 64, 32
    x = jax.random.normal(k_x, (B, Ni), jnp.float32)
    params = _init_params(k_p, Ni, Nh, No)

    out = jax.block_until_ready(linear_model(x, params, tm=32))
    assert out.shape == (B, No), out.shape

    ref = jax.block_until_ready(_reference(x, params))
    err = float(jnp.max(jnp.abs(out - ref)))
    assert jnp.allclose(out, ref, rtol=1e-3, atol=1e-3), err

    print("KERNEL_OK")
</pallas_src>

<mosaic_0001>
module attributes {stable_mosaic.version = 11 : i64} {
  func.func @_linear_model_kernel(%arg0: i32, %arg1: memref<32x32xf32, #tpu.memory_space<vmem>>, %arg2: memref<32x64xf32, #tpu.memory_space<vmem>>, %arg3: memref<1x64xf32, #tpu.memory_space<vmem>>, %arg4: memref<64x64xf32, #tpu.memory_space<vmem>>, %arg5: memref<1x64xf32, #tpu.memory_space<vmem>>, %arg6: memref<64x64xf32, #tpu.memory_space<vmem>>, %arg7: memref<1x64xf32, #tpu.memory_space<vmem>>, %arg8: memref<64x32xf32, #tpu.memory_space<vmem>>, %arg9: memref<1x32xf32, #tpu.memory_space<vmem>>, %arg10: memref<32x32xf32, #tpu.memory_space<vmem>>) attributes {dimension_semantics = [#tpu.dimension_semantics<parallel>], iteration_bounds = array<i64: 2>, scalar_prefetch = 0 : i64, scratch_operands = 0 : i64, tpu.core_type = #tpu.core_type<tc>, window_params = [{transform_indices = @transform_0, window_bounds = array<i64: 32, 32>}, {pipeline_mode = #tpu.pipeline_mode<synchronous>, transform_indices = @transform_1, window_bounds = array<i64: 32, 64>}, {pipeline_mode = #tpu.pipeline_mode<synchronous>, transform_indices = @transform_2, window_bounds = array<i64: 1, 64>}, {pipeline_mode = #tpu.pipeline_mode<synchronous>, transform_indices = @transform_3, window_bounds = array<i64: 64, 64>}, {pipeline_mode = #tpu.pipeline_mode<synchronous>, transform_indices = @transform_4, window_bounds = array<i64: 1, 64>}, {pipeline_mode = #tpu.pipeline_mode<synchronous>, transform_indices = @transform_5, window_bounds = array<i64: 64, 64>}, {pipeline_mode = #tpu.pipeline_mode<synchronous>, transform_indices = @transform_6, window_bounds = array<i64: 1, 64>}, {pipeline_mode = #tpu.pipeline_mode<synchronous>, transform_indices = @transform_7, window_bounds = array<i64: 64, 32>}, {pipeline_mode = #tpu.pipeline_mode<synchronous>, transform_indices = @transform_8, window_bounds = array<i64: 1, 32>}, {transform_indices = @transform_9, window_bounds = array<i64: 32, 32>}]} {
    %c0 = arith.constant 0 : index
    %c0_0 = arith.constant 0 : index
    %0 = vector.load %arg1[%c0, %c0_0] : memref<32x32xf32, #tpu.memory_space<vmem>>, vector<32x32xf32>
    %c0_1 = arith.constant 0 : index
    %c0_2 = arith.constant 0 : index
    %1 = vector.load %arg2[%c0_1, %c0_2] : memref<32x64xf32, #tpu.memory_space<vmem>>, vector<32x64xf32>
    %cst = arith.constant dense<0.000000e+00> : vector<32x64xf32>
    %2 = tpu.matmul %0, %1, %cst {dimension_numbers = #tpu.dot_dimension_numbers<[1], [0], [0], [1], [0, 0, 1, 1], [], []>} : vector<32x32xf32>, vector<32x64xf32>, vector<32x64xf32> -> vector<32x64xf32>
    %c0_3 = arith.constant 0 : index
    %c0_4 = arith.constant 0 : index
    %3 = vector.load %arg3[%c0_3, %c0_4] : memref<1x64xf32, #tpu.memory_space<vmem>>, vector<1x64xf32>
    %4 = vector.broadcast %3 : vector<1x64xf32> to vector<32x64xf32>
    %5 = arith.addf %2, %4 : vector<32x64xf32>
    %c0_5 = arith.constant 0 : index
    %c0_6 = arith.constant 0 : index
    %6 = vector.load %arg4[%c0_5, %c0_6] : memref<64x64xf32, #tpu.memory_space<vmem>>, vector<64x64xf32>
    %cst_7 = arith.constant dense<0.000000e+00> : vector<32x64xf32>
    %7 = tpu.matmul %5, %6, %cst_7 {dimension_numbers = #tpu.dot_dimension_numbers<[1], [0], [0], [1], [0, 0, 1, 1], [], []>} : vector<32x64xf32>, vector<64x64xf32>, vector<32x64xf32> -> vector<32x64xf32>
    %c0_8 = arith.constant 0 : index
    %c0_9 = arith.constant 0 : index
    %8 = vector.load %arg5[%c0_8, %c0_9] : memref<1x64xf32, #tpu.memory_space<vmem>>, vector<1x64xf32>
    %9 = vector.broadcast %8 : vector<1x64xf32> to vector<32x64xf32>
    %10 = arith.addf %7, %9 : vector<32x64xf32>
    %cst_10 = arith.constant 0.000000e+00 : f32
    %11 = vector.broadcast %cst_10 : f32 to vector<32x64xf32>
    %12 = arith.maximumf %10, %11 : vector<32x64xf32>
    %13 = arith.addf %5, %12 : vector<32x64xf32>
    %c0_11 = arith.constant 0 : index
    %c0_12 = arith.constant 0 : index
    %14 = vector.load %arg6[%c0_11, %c0_12] : memref<64x64xf32, #tpu.memory_space<vmem>>, vector<64x64xf32>
    %cst_13 = arith.constant dense<0.000000e+00> : vector<32x64xf32>
    %15 = tpu.matmul %13, %14, %cst_13 {dimension_numbers = #tpu.dot_dimension_numbers<[1], [0], [0], [1], [0, 0, 1, 1], [], []>} : vector<32x64xf32>, vector<64x64xf32>, vector<32x64xf32> -> vector<32x64xf32>
    %c0_14 = arith.constant 0 : index
    %c0_15 = arith.constant 0 : index
    %16 = vector.load %arg7[%c0_14, %c0_15] : memref<1x64xf32, #tpu.memory_space<vmem>>, vector<1x64xf32>
    %17 = vector.broadcast %16 : vector<1x64xf32> to vector<32x64xf32>
    %18 = arith.addf %15, %17 : vector<32x64xf32>
    %cst_16 = arith.constant 0.000000e+00 : f32
    %19 = vector.broadcast %cst_16 : f32 to vector<32x64xf32>
    %20 = arith.maximumf %18, %19 : vector<32x64xf32>
    %21 = arith.addf %13, %20 : vector<32x64xf32>
    %c0_17 = arith.constant 0 : index
    %c0_18 = arith.constant 0 : index
    %22 = vector.load %arg8[%c0_17, %c0_18] : memref<64x32xf32, #tpu.memory_space<vmem>>, vector<64x32xf32>
    %cst_19 = arith.constant dense<0.000000e+00> : vector<32x32xf32>
    %23 = tpu.matmul %21, %22, %cst_19 {dimension_numbers = #tpu.dot_dimension_numbers<[1], [0], [0], [1], [0, 0, 1, 1], [], []>} : vector<32x64xf32>, vector<64x32xf32>, vector<32x32xf32> -> vector<32x32xf32>
    %c0_20 = arith.constant 0 : index
    %c0_21 = arith.constant 0 : index
    %24 = vector.load %arg9[%c0_20, %c0_21] : memref<1x32xf32, #tpu.memory_space<vmem>>, vector<1x32xf32>
    %25 = vector.broadcast %24 : vector<1x32xf32> to vector<32x32xf32>
    %26 = arith.addf %23, %25 : vector<32x32xf32>
    %cst_22 = arith.constant 0.000000e+00 : f32
    %27 = vector.broadcast %cst_22 : f32 to vector<32x32xf32>
    %28 = arith.maximumf %26, %27 : vector<32x32xf32>
    %c0_23 = arith.constant 0 : index
    %c0_24 = arith.constant 0 : index
    %29 = vector.load %arg10[%c0_23, %c0_24] : memref<32x32xf32, #tpu.memory_space<vmem>>, vector<32x32xf32>
    tpu.vector_store %arg10[%c0_23, %c0_24], %28 {strides = array<i32>} : memref<32x32xf32, #tpu.memory_space<vmem>>, vector<32x32xf32>,
    return
  }
  func.func @transform_0(%arg0: i32) -> (i32, i32) {
    %c0_i32 = arith.constant 0 : i32
    %c0_i32_0 = arith.constant 0 : i32
    return %arg0, %c0_i32 : i32, i32
  }
  func.func @transform_1(%arg0: i32) -> (i32, i32) {
    %c0_i32 = arith.constant 0 : i32
    %c0_i32_0 = arith.constant 0 : i32
    %c0_i32_1 = arith.constant 0 : i32
    return %c0_i32, %c0_i32_0 : i32, i32
  }
  func.func @transform_2(%arg0: i32) -> (i32, i32) {
    %c0_i32 = arith.constant 0 : i32
    %c0_i32_0 = arith.constant 0 : i32
    %c0_i32_1 = arith.constant 0 : i32
    return %c0_i32, %c0_i32_0 : i32, i32
  }
  func.func @transform_3(%arg0: i32) -> (i32, i32) {
    %c0_i32 = arith.constant 0 : i32
    %c0_i32_0 = arith.constant 0 : i32
    %c0_i32_1 = arith.constant 0 : i32
    return %c0_i32, %c0_i32_0 : i32, i32
  }
  func.func @transform_4(%arg0: i32) -> (i32, i32) {
    %c0_i32 = arith.constant 0 : i32
    %c0_i32_0 = arith.constant 0 : i32
    %c0_i32_1 = arith.constant 0 : i32
    return %c0_i32, %c0_i32_0 : i32, i32
  }
  func.func @transform_5(%arg0: i32) -> (i32, i32) {
    %c0_i32 = arith.constant 0 : i32
    %c0_i32_0 = arith.constant 0 : i32
    %c0_i32_1 = arith.constant 0 : i32
    return %c0_i32, %c0_i32_0 : i32, i32
  }
  func.func @transform_6(%arg0: i32) -> (i32, i32) {
    %c0_i32 = arith.constant 0 : i32
    %c0_i32_0 = arith.constant 0 : i32
    %c0_i32_1 = arith.constant 0 : i32
    return %c0_i32, %c0_i32_0 : i32, i32
  }
  func.func @transform_7(%arg0: i32) -> (i32, i32) {
    %c0_i32 = arith.constant 0 : i32
    %c0_i32_0 = arith.constant 0 : i32
    %c0_i32_1 = arith.constant 0 : i32
    return %c0_i32, %c0_i32_0 : i32, i32
  }
  func.func @transform_8(%arg0: i32) -> (i32, i32) {
    %c0_i32 = arith.constant 0 : i32
    %c0_i32_0 = arith.constant 0 : i32
    %c0_i32_1 = arith.constant 0 : i32
    return %c0_i32, %c0_i32_0 : i32, i32
  }
  func.func @transform_9(%arg0: i32) -> (i32, i32) {
    %c0_i32 = arith.constant 0 : i32
    %c0_i32_0 = arith.constant 0 : i32
    return %arg0, %c0_i32 : i32, i32
  }
}

</mosaic_0001>

<llo_original>
// kernel: tpu_custom_call.1
$region0: #{tpu_custom_call.1}
  #allocation0 [shape = 'u32[]', space=smem, size = 0x4, offset = 0x4, fixed_abs, tag = 'smem constant byte address 0x4 - core index']
  #allocation1 [shape = 'u32[144,128]{1,0:T(1,128)}', space=vmem, size = 0x12000, scoped, tag = 'internal scratch']
  %s0 = inlined_call_operand.vmem [shape: f32[64,32], index: 0, kind: input, shape index: {}]
  %s1 = inlined_call_operand.vmem [shape: f32[32,64], index: 1, kind: input, shape index: {}]
  %s2 = inlined_call_operand.vmem [shape: f32[1,64], index: 2, kind: input, shape index: {}]
  %s3 = inlined_call_operand.vmem [shape: f32[64,64], index: 3, kind: input, shape index: {}]
  %s4 = inlined_call_operand.vmem [shape: f32[1,64], index: 4, kind: input, shape index: {}]
  %s5 = inlined_call_operand.vmem [shape: f32[64,64], index: 5, kind: input, shape index: {}]
  %s6 = inlined_call_operand.vmem [shape: f32[1,64], index: 6, kind: input, shape index: {}]
  %s7 = inlined_call_operand.vmem [shape: f32[64,32], index: 7, kind: input, shape index: {}]
  %s8 = inlined_call_operand.vmem [shape: f32[1,32], index: 8, kind: input, shape index: {}]
  %s9 = inlined_call_operand.vmem [shape: f32[64,32], index: 9, kind: output, shape index: {}]
  %s10 = sld [smem:[#allocation0]]
  $region69: #{tpu_custom_call.1} parent=0
    _
  %s12 = ssub.s32 1, %s10
  %s13 = scalar_select 0, %s12, %s10
  loop: start=0, step=1, limit=4
  $region2: #{tpu_custom_call.1} parent=0 // loop_pre_header
    _
  $region3: #{tpu_custom_call.1} parent=0 // loop_header
    %s15 = sphi 0, %s19
    %p16 = scmp.ge.s32.totalorder %s15, 4
    %s25 = sphi 0, %s27
    %s28 = sphi 0, %s25
    %s29 = sphi 0, %s28
    %s45 = sphi 0, %s29
    %s49 = sphi 0, %s49
    %s51 = sphi 0, %s49
    %s52 = sphi 0, %s51
    %s66 = sphi 0, %s52
    %s70 = sphi 0, %s70
    %s72 = sphi 0, %s70
    %s73 = sphi 0, %s72
    %s87 = sphi 0, %s73
    %s91 = sphi 0, %s91
    %s93 = sphi 0, %s91
    %s94 = sphi 0, %s93
    %s108 = sphi 0, %s94
    %s112 = sphi 0, %s112
    %s114 = sphi 0, %s112
    %s115 = sphi 0, %s114
    %s129 = sphi 0, %s115
    %s133 = sphi 0, %s133
    %s135 = sphi 0, %s133
    %s136 = sphi 0, %s135
    %s150 = sphi 0, %s136
    %s154 = sphi 0, %s154
    %s156 = sphi 0, %s154
    %s157 = sphi 0, %s156
    %s171 = sphi 0, %s157
    %s175 = sphi 0, %s175
    %s177 = sphi 0, %s175
    %s178 = sphi 0, %s177
    %s192 = sphi 0, %s178
    %s196 = sphi 0, %s196
    %s198 = sphi 0, %s196
    %s199 = sphi 0, %s198
    %s213 = sphi 0, %s199
    %s219 = sphi 0, %s221
    %s222 = sphi 0, %s219
    %s223 = sphi 0, %s222
    %s239 = sphi 0, %s223
  $region4: #{tpu_custom_call.1} parent=0 // loop_header_branch
    %18 = sbr.rel (%p16) target = $region8
  $region5: #{tpu_custom_call.1} parent=0 // loop_body
    %s20 = ssub.s32 %s15, 1
    %s21 = ssub.s32 %s15, 2
    %s22 = sadd.s32 %s15, 1
    %s23 = ssub.s32 %s15, %s22
    %p24 = scmp.eq.s32.totalorder %s23, 0
    %s26 = sadd.s32 %s25, 1
    %s27 = scalar_select %p24, %s25, %s26
    %p30 = pneg %p24
    %p31 = scmp.eq.s32.totalorder %s15, 1
    %p32 = por %p30, %p31
    %p33 = scmp.ne.s32.totalorder %s25, %s28
    %p34 = scmp.eq.s32.totalorder %s15, 0
    %p35 = por %p33, %p34
    %p36 = scmp.ne.s32.totalorder %s25, %s28
    %p37 = scmp.eq.s32.totalorder %s20, 1
    %p38 = por %p36, %p37
    %p39 = scmp.ne.s32.totalorder %s28, %s29
    %p40 = scmp.eq.s32.totalorder %s20, 0
    %p41 = por %p39, %p40
    %p42 = scmp.ne.s32.totalorder %s28, %s29
    %p43 = scmp.eq.s32.totalorder %s21, 1
    %p44 = por %p42, %p43
    %p46 = scmp.ne.s32.totalorder %s29, %s45
    %p47 = scmp.eq.s32.totalorder %s21, 0
    %p48 = por %p46, %p47
    %s50 = sadd.s32 %s49, 1
    %p53 = scmp.eq.s32.totalorder %s15, 1
    %p54 = scmp.ne.s32.totalorder %s49, %s51
    %p55 = scmp.eq.s32.totalorder %s15, 0
    %p56 = por %p54, %p55
    %p57 = scmp.ne.s32.totalorder %s49, %s51
    %p58 = scmp.eq.s32.totalorder %s20, 1
    %p59 = por %p57, %p58
    %p60 = scmp.ne.s32.totalorder %s51, %s52
    %p61 = scmp.eq.s32.totalorder %s20, 0
    %p62 = por %p60, %p61
    %p63 = scmp.ne.s32.totalorder %s51, %s52
    %p64 = scmp.eq.s32.totalorder %s21, 1
    %p65 = por %p63, %p64
    %p67 = scmp.ne.s32.totalorder %s52, %s66
    %p68 = scmp.eq.s32.totalorder %s21, 0
    %p69 = por %p67, %p68
    %s71 = sadd.s32 %s70, 1
    %p74 = scmp.eq.s32.totalorder %s15, 1
    %p75 = scmp.ne.s32.totalorder %s70, %s72
    %p76 = scmp.eq.s32.totalorder %s15, 0
    %p77 = por %p75, %p76
    %p78 = scmp.ne.s32.totalorder %s70, %s72
    %p79 = scmp.eq.s32.totalorder %s20, 1
    %p80 = por %p78, %p79
    %p81 = scmp.ne.s32.totalorder %s72, %s73
    %p82 = scmp.eq.s32.totalorder %s20, 0
    %p83 = por %p81, %p82
    %p84 = scmp.ne.s32.totalorder %s72, %s73
    %p85 = scmp.eq.s32.totalorder %s21, 1
    %p86 = por %p84, %p85
    %p88 = scmp.ne.s32.totalorder %s73, %s87
    %p89 = scmp.eq.s32.totalorder %s21, 0
    %p90 = por %p88, %p89
    %s92 = sadd.s32 %s91, 1
    %p95 = scmp.eq.s32.totalorder %s15, 1
    %p96 = scmp.ne.s32.totalorder %s91, %s93
    %p97 = scmp.eq.s32.totalorder %s15, 0
    %p98 = por %p96, %p97
    %p99 = scmp.ne.s32.totalorder %s91, %s93
    %p100 = scmp.eq.s32.totalorder %s20, 1
    %p101 = por %p99, %p100
    %p102 = scmp.ne.s32.totalorder %s93, %s94
    %p103 = scmp.eq.s32.totalorder %s20, 0
    %p104 = por %p102, %p103
    %p105 = scmp.ne.s32.totalorder %s93, %s94
    %p106 = scmp.eq.s32.totalorder %s21, 1
    %p107 = por %p105, %p106
    %p109 = scmp.ne.s32.totalorder %s94, %s108
    %p110 = scmp.eq.s32.totalorder %s21, 0
    %p111 = por %p109, %p110
    %s113 = sadd.s32 %s112, 1
    %p116 = scmp.eq.s32.totalorder %s15, 1
    %p117 = scmp.ne.s32.totalorder %s112, %s114
    %p118 = scmp.eq.s32.totalorder %s15, 0
    %p119 = por %p117, %p118
    %p120 = scmp.ne.s32.totalorder %s112, %s114
    %p121 = scmp.eq.s32.totalorder %s20, 1
    %p122 = por %p120, %p121
    %p123 = scmp.ne.s32.totalorder %s114, %s115
    %p124 = scmp.eq.s32.totalorder %s20, 0
    %p125 = por %p123, %p124
    %p126 = scmp.ne.s32.totalorder %s114, %s115
    %p127 = scmp.eq.s32.totalorder %s21, 1
    %p128 = por %p126, %p127
    %p130 = scmp.ne.s32.totalorder %s115, %s129
    %p131 = scmp.eq.s32.totalorder %s21, 0
    %p132 = por %p130, %p131
    %s134 = sadd.s32 %s133, 1
    %p137 = scmp.eq.s32.totalorder %s15, 1
    %p138 = scmp.ne.s32.totalorder %s133, %s135
    %p139 = scmp.eq.s32.totalorder %s15, 0
    %p140 = por %p138, %p139
    %p141 = scmp.ne.s32.totalorder %s133, %s135
    %p142 = scmp.eq.s32.totalorder %s20, 1
    %p143 = por %p141, %p142
    %p144 = scmp.ne.s32.totalorder %s135, %s136
    %p145 = scmp.eq.s32.totalorder %s20, 0
    %p146 = por %p144, %p145
    %p147 = scmp.ne.s32.totalorder %s135, %s136
    %p148 = scmp.eq.s32.totalorder %s21, 1
    %p149 = por %p147, %p148
    %p151 = scmp.ne.s32.totalorder %s136, %s150
    %p152 = scmp.eq.s32.totalorder %s21, 0
    %p153 = por %p151, %p152
    %s155 = sadd.s32 %s154, 1
    %p158 = scmp.eq.s32.totalorder %s15, 1
    %p159 = scmp.ne.s32.totalorder %s154, %s156
    %p160 = scmp.eq.s32.totalorder %s15, 0
    %p161 = por %p159, %p160
    %p162 = scmp.ne.s32.totalorder %s154, %s156
    %p163 = scmp.eq.s32.totalorder %s20, 1
    %p164 = por %p162, %p163
    %p165 = scmp.ne.s32.totalorder %s156, %s157
    %p166 = scmp.eq.s32.totalorder %s20, 0
    %p167 = por %p165, %p166
    %p168 = scmp.ne.s32.totalorder %s156, %s157
    %p169 = scmp.eq.s32.totalorder %s21, 1
    %p170 = por %p168, %p169
    %p172 = scmp.ne.s32.totalorder %s157, %s171
    %p173 = scmp.eq.s32.totalorder %s21, 0
    %p174 = por %p172, %p173
    %s176 = sadd.s32 %s175, 1
    %p179 = scmp.eq.s32.totalorder %s15, 1
    %p180 = scmp.ne.s32.totalorder %s175, %s177
    %p181 = scmp.eq.s32.totalorder %s15, 0
    %p182 = por %p180, %p181
    %p183 = scmp.ne.s32.totalorder %s175, %s177
    %p184 = scmp.eq.s32.totalorder %s20, 1
    %p185 = por %p183, %p184
    %p186 = scmp.ne.s32.totalorder %s177, %s178
    %p187 = scmp.eq.s32.totalorder %s20, 0
    %p188 = por %p186, %p187
    %p189 = scmp.ne.s32.totalorder %s177, %s178
    %p190 = scmp.eq.s32.totalorder %s21, 1
    %p191 = por %p189, %p190
    %p193 = scmp.ne.s32.totalorder %s178, %s192
    %p194 = scmp.eq.s32.totalorder %s21, 0
    %p195 = por %p193, %p194
    %s197 = sadd.s32 %s196, 1
    %p200 = scmp.eq.s32.totalorder %s15, 1
    %p201 = scmp.ne.s32.totalorder %s196, %s198
    %p202 = scmp.eq.s32.totalorder %s15, 0
    %p203 = por %p201, %p202
    %p204 = scmp.ne.s32.totalorder %s196, %s198
    %p205 = scmp.eq.s32.totalorder %s20, 1
    %p206 = por %p204, %p205
    %p207 = scmp.ne.s32.totalorder %s198, %s199
    %p208 = scmp.eq.s32.totalorder %s20, 0
    %p209 = por %p207, %p208
    %p210 = scmp.ne.s32.totalorder %s198, %s199
    %p211 = scmp.eq.s32.totalorder %s21, 1
    %p212 = por %p210, %p211
    %p214 = scmp.ne.s32.totalorder %s199, %s213
    %p215 = scmp.eq.s32.totalorder %s21, 0
    %p216 = por %p214, %p215
    %s217 = ssub.s32 %s15, %s22
    %p218 = scmp.eq.s32.totalorder %s217, 0
    %s220 = sadd.s32 %s219, 1
    %s221 = scalar_select %p218, %s219, %s220
    %p224 = pneg %p218
    %p225 = scmp.eq.s32.totalorder %s15, 1
    %p226 = por %p224, %p225
    %p227 = scmp.ne.s32.totalorder %s219, %s222
    %p228 = scmp.eq.s32.totalorder %s15, 0
    %p229 = por %p227, %p228
    %p230 = scmp.ne.s32.totalorder %s219, %s222
    %p231 = scmp.eq.s32.totalorder %s20, 1
    %p232 = por %p230, %p231
    %p233 = scmp.ne.s32.totalorder %s222, %s223
    %p234 = scmp.eq.s32.totalorder %s20, 0
    %p235 = por %p233, %p234
    %p236 = scmp.ne.s32.totalorder %s222, %s223
    %p237 = scmp.eq.s32.totalorder %s21, 1
    %p238 = por %p236, %p237
    %p240 = scmp.ne.s32.totalorder %s223, %s239
    %p241 = scmp.eq.s32.totalorder %s21, 0
    %p242 = por %p240, %p241
    %p243 = scmp.le.s32.totalorder 1, %s15
    %p244 = scmp.lt.s32.totalorder %s15, 3
    %p245 = pnand %p243, %p244
    %p246 = pneg %p245
    // Predicated region
    $region9: #{tpu_custom_call.1} parent=5 // pred_check
      _
    $region10: #{tpu_custom_call.1} parent=5 // pred_check_branch
      %248 = sbr.rel (%p245) target = $region12
    $region11: #{tpu_custom_call.1} parent=5 // pred_region
      %s249 = ssub.s32 %s15, 1
      // Predicated region
      $region13: #{tpu_custom_call.1} parent=11 // pred_check
        %p250 = pneg %p62
      $region14: #{tpu_custom_call.1} parent=11 // pred_check_branch
        %252 = sbr.rel (%p250) target = $region16
      $region15: #{tpu_custom_call.1} parent=11 // pred_region
        _
      $region16: #{tpu_custom_call.1} parent=11 // pred_fallthru
        _
      // Predicated region
      $region17: #{tpu_custom_call.1} parent=11 // pred_check
        %p253 = pneg %p83
      $region18: #{tpu_custom_call.1} parent=11 // pred_check_branch
        %255 = sbr.rel (%p253) target = $region20
      $region19: #{tpu_custom_call.1} parent=11 // pred_region
        _
      $region20: #{tpu_custom_call.1} parent=11 // pred_fallthru
        _
      // Predicated region
      $region21: #{tpu_custom_call.1} parent=11 // pred_check
        %p256 = pneg %p104
      $region22: #{tpu_custom_call.1} parent=11 // pred_check_branch
        %258 = sbr.rel (%p256) target = $region24
      $region23: #{tpu_custom_call.1} parent=11 // pred_region
        _
      $region24: #{tpu_custom_call.1} parent=11 // pred_fallthru
        _
      // Predicated region
      $region25: #{tpu_custom_call.1} parent=11 // pred_check
        %p259 = pneg %p125
      $region26: #{tpu_custom_call.1} parent=11 // pred_check_branch
        %261 = sbr.rel (%p259) target = $region28
      $region27: #{tpu_custom_call.1} parent=11 // pred_region
        _
      $region28: #{tpu_custom_call.1} parent=11 // pred_fallthru
        _
      // Predicated region
      $region29: #{tpu_custom_call.1} parent=11 // pred_check
        %p262 = pneg %p146
      $region30: #{tpu_custom_call.1} parent=11 // pred_check_branch
        %264 = sbr.rel (%p262) target = $region32
      $region31: #{tpu_custom_call.1} parent=11 // pred_region
        _
      $region32: #{tpu_custom_call.1} parent=11 // pred_fallthru
        _
      // Predicated region
      $region33: #{tpu_custom_call.1} parent=11 // pred_check
        %p265 = pneg %p167
      $region34: #{tpu_custom_call.1} parent=11 // pred_check_branch
        %267 = sbr.rel (%p265) target = $region36
      $region35: #{tpu_custom_call.1} parent=11 // pred_region
        _
      $region36: #{tpu_custom_call.1} parent=11 // pred_fallthru
        _
      // Predicated region
      $region37: #{tpu_custom_call.1} parent=11 // pred_check
        %p268 = pneg %p188
      $region38: #{tpu_custom_call.1} parent=11 // pred_check_branch
        %270 = sbr.rel (%p268) target = $region40
      $region39: #{tpu_custom_call.1} parent=11 // pred_region
        _
      $region40: #{tpu_custom_call.1} parent=11 // pred_fallthru
        _
      // Predicated region
      $region41: #{tpu_custom_call.1} parent=11 // pred_check
        %p271 = pneg %p209
      $region42: #{tpu_custom_call.1} parent=11 // pred_check_branch
        %273 = sbr.rel (%p271) target = $region44
      $region43: #{tpu_custom_call.1} parent=11 // pred_region
        _
      $region44: #{tpu_custom_call.1} parent=11 // pred_fallthru
        _
    $region12: #{tpu_custom_call.1} parent=5 // pred_fallthru
      _
    %p274 = scmp.lt.s32.totalorder %s15, 2
    // Predicated region
    $region45: #{tpu_custom_call.1} parent=5 // pred_check
      %p275 = pneg %p274
    $region46: #{tpu_custom_call.1} parent=5 // pred_check_branch
      %277 = sbr.rel (%p275) target = $region48
    $region47: #{tpu_custom_call.1} parent=5 // pred_region
      // Predicated region
      $region49: #{tpu_custom_call.1} parent=47 // pred_check
        %p278 = pneg %p35
      $region50: #{tpu_custom_call.1} parent=47 // pred_check_branch
        %280 = sbr.rel (%p278) target = $region52
      $region51: #{tpu_custom_call.1} parent=47 // pred_region
        %s281 = smul.u32 4, %s15
        %p282 = scmp.lt.s32.totalorder %s281, 7
        %s283 = scalar_select %p282, %s281, 7
        %s284 = smul.addr %s283, 8
        %s285 = scalar_lea.vmem %s0, %s284
        %s286 = smul.u32 4, %s15
      $region52: #{tpu_custom_call.1} parent=47 // pred_fallthru
        _
    $region48: #{tpu_custom_call.1} parent=5 // pred_fallthru
      _
    %p287 = scmp.le.s32.totalorder 1, %s15
    %p288 = scmp.lt.s32.totalorder %s15, 3
    %p289 = pnand %p287, %p288
    %p290 = pneg %p289
    // Predicated region
    $region53: #{tpu_custom_call.1} parent=5 // pred_check
      _
    $region54: #{tpu_custom_call.1} parent=5 // pred_check_branch
      %292 = sbr.rel (%p289) target = $region56
    $region55: #{tpu_custom_call.1} parent=5 // pred_region
      %s293 = ssub.s32 %s15, 1
      %s294 = smul.u32 4, %s20
      %p295 = scmp.lt.s32.totalorder %s294, 7
      %s296 = scalar_select %p295, %s294, 7
      %s297 = smul.addr %s296, 8
      %s298 = scalar_lea.vmem %s0, %s297
      %p299 = pneg %p41
      %p300 = pneg %p38
      %p301 = pneg %p62
      %p302 = pneg %p59
      %p303 = pneg %p83
      %p304 = pneg %p80
      %p305 = pneg %p104
      %p306 = pneg %p101
      %p307 = pneg %p125
      %p308 = pneg %p122
      %p309 = pneg %p146
      %p310 = pneg %p143
      %p311 = pneg %p167
      %p312 = pneg %p164
      %p313 = pneg %p188
      %p314 = pneg %p185
      %p315 = pneg %p209
      %p316 = pneg %p206
      %p317 = pneg %p235
      %p318 = pneg %p232
      %s319 = smul.u32 4, %s20
      %p320 = scmp.lt.s32.totalorder %s319, 7
      %s321 = scalar_select %p320, %s319, 7
      %s322 = smul.addr %s321, 8
      %s323 = scalar_lea.vmem %s9, %s322
      %s324 = smul.u32 4, %s20
      %p325 = scmp.lt.s32.totalorder %s324, 7
      %s326 = scalar_select %p325, %s324, 7
      %s327 = smul.addr %s326, 8
      %s328 = scalar_lea.vmem %s0, %s327
      %s329 = smul.u32 4, %s20
      %s330 = smul.u32 4, %s20
      %p331 = scmp.lt.s32.totalorder %s330, 7
      %s332 = scalar_select %p331, %s330, 7
      %s333 = smul.addr %s332, 8
      %s334 = scalar_lea.vmem %s9, %s333
      %s335 = smul.u32 4, %s20
      %v336 = vld [vmem:[%s328] sm:$0xff]
      %v337 = vld [vmem:[%s328 + $0x8] sm:$0xff]
      %v338 = vld [vmem:[%s328 + $0x10] sm:$0xff]
      %v339 = vld [vmem:[%s328 + $0x18] sm:$0xff]
      %v340 = vld [vmem:[%s1] sm:$0xff]
      %v341 = vld [vmem:[%s1 + $0x8] sm:$0xff]
      %v342 = vld [vmem:[%s1 + $0x10] sm:$0xff]
      %v343 = vld [vmem:[%s1 + $0x18] sm:$0xff]
      %v344 = vld [vmem:[%s2] sm:$0x1]
      %v346 = vlaneseq
      %v347 = vshrl.u32 %v346, 7
      %v348 = vsub.s32 0, %v347
      %v349 = vrot.slane %v344, %v348
      %vm351 = vcmask 261120
      %v353 = vsel %vm351, %v336, 0
      %v356 = vsel %vm351, %v337, 0
      %v359 = vsel %vm351, %v338, 0
      %v362 = vsel %vm351, %v339, 0
      %364 = vmatprep.subr.mxu0 0.0
      %365 = vmatpush1.msra.mxu0 %v340
      %366 = vmatprep.subr.mxu0 0.0
      %367 = vmatpush1.msra.mxu0 %v341
      %368 = vmatprep.subr.mxu0 0.0
      %369 = vmatpush1.msra.mxu0 %v342
      %370 = vmatprep.subr.mxu0 0.0
      %371 = vmatpush1.msra.mxu0 %v343
      %372 = vmatprep.subr.mxu0 0.0
      %373 = vmatpush1.msra.mxu0 0.0
      %374 = vmatprep.subr.mxu0 0.0
      %375 = vmatpush1.msra.mxu0 0.0
      %376 = vmatprep.subr.mxu0 0.0
      %377 = vmatpush1.msra.mxu0 0.0
      %378 = vmatprep.subr.mxu0 0.0
      %379 = vmatpush1.msra.mxu0 0.0
      %380 = vmatprep.subr.mxu0 0.0
      %381 = vmatpush1.msra.mxu0 0.0
      %382 = vmatprep.subr.mxu0 0.0
      %383 = vmatpush1.msra.mxu0 0.0
      %384 = vmatprep.subr.mxu0 0.0
      %385 = vmatpush1.msra.mxu0 0.0
      %386 = vmatprep.subr.mxu0 0.0
      %387 = vmatpush1.msra.mxu0 0.0
      %388 = vmatprep.subr.mxu0 0.0
      %389 = vmatpush1.msra.mxu0 0.0
      %390 = vmatprep.subr.mxu0 0.0
      %391 = vmatpush1.msra.mxu0 0.0
      %392 = vmatprep.subr.mxu0 0.0
      %393 = vmatpush1.msra.mxu0 0.0
      %394 = vmatprep.subr.mxu0 0.0
      %395 = vmatpush1.msra.mxu0 0.0
      %396 = vmatprep.subr.mxu0 0.0
      %397 = vmatpush1.msra.mxu0 0.0
      %398 = vmatprep.subr.mxu0 0.0
      %399 = vmatpush1.msra.mxu0 0.0
      %400 = vmatprep.subr.mxu0 0.0
      %401 = vmatpush1.msra.mxu0 0.0
      %402 = vmatprep.subr.mxu0 0.0
      %403 = vmatpush1.msra.mxu0 0.0
      %404 = vmatprep.subr.mxu0 0.0
      %405 = vmatpush1.msra.mxu0 0.0
      %406 = vmatprep.subr.mxu0 0.0
      %407 = vmatpush1.msra.mxu0 0.0
      %408 = vmatprep.subr.mxu0 0.0
      %409 = vmatpush1.msra.mxu0 0.0
      %410 = vmatprep.subr.mxu0 0.0
      %411 = vmatpush1.msra.mxu0 0.0
      %412 = vmatprep.subr.mxu0 0.0
      %413 = vmatpush1.msra.mxu0 0.0
      %414 = vmatprep.subr.mxu0 0.0
      %415 = vmatpush1.msra.mxu0 0.0
      %416 = vmatprep.subr.mxu0 0.0
      %417 = vmatpush1.msra.mxu0 0.0
      %418 = vmatprep.subr.mxu0 0.0
      %419 = vmatpush1.msra.mxu0 0.0
      %420 = vmatprep.subr.mxu0 0.0
      %421 = vmatpush1.msra.mxu0 0.0
      %422 = vmatprep.subr.mxu0 0.0
      %423 = vmatpush1.msra.mxu0 0.0
      %424 = vmatprep.subr.mxu0 0.0
      %425 = vmatpush1.msra.mxu0 0.0
      %426 = vmatprep.subr.mxu0 0.0
      %427 = vmatpush1.msra.mxu0 0.0
      %428 = vmatprep.mubr.f32.mxu0 0.0
      %429 = vmatmul.mubr.f32.gmra.mrb[0].mxu0 %v353
      %v430 = vpop.f32.mrb[0].mxu0
      %v431 = vadd.f32 %v349, %v430
      %v432 = vpop.f32.mrb[0].mxu0
      %433 = vmatprep.mubr.f32.mxu0 0.0
      %434 = vmatmul.mubr.f32.gmra.mrb[0].mxu0 %v356
      %v435 = vpop.f32.mrb[0].mxu0
      %v436 = vadd.f32 %v349, %v435
      %v437 = vpop.f32.mrb[0].mxu0
      %438 = vmatprep.mubr.f32.mxu0 0.0
      %439 = vmatmul.mubr.f32.gmra.mrb[0].mxu0 %v359
      %v440 = vpop.f32.mrb[0].mxu0
      %v441 = vadd.f32 %v349, %v440
      %v442 = vpop.f32.mrb[0].mxu0
      %443 = vmatprep.mubr.f32.mxu0 0.0
      %444 = vmatmul.mubr.f32.gmra.mrb[0].mxu0 %v362
      %v445 = vpop.f32.mrb[0].mxu0
      %v446 = vadd.f32 %v349, %v445
      %v447 = vpop.f32.mrb[0].mxu0
      %448 = vdwg.mxu0
      %v449 = vld [vmem:[%s3] sm:$0xff]
      %v450 = vld [vmem:[%s3 + $0x8] sm:$0xff]
      %v451 = vld [vmem:[%s3 + $0x10] sm:$0xff]
      %v452 = vld [vmem:[%s3 + $0x18] sm:$0xff]
      %v453 = vld [vmem:[%s3 + $0x20] sm:$0xff]
      %v454 = vld [vmem:[%s3 + $0x28] sm:$0xff]
      %v455 = vld [vmem:[%s3 + $0x30] sm:$0xff]
      %v456 = vld [vmem:[%s3 + $0x38] sm:$0xff]
      %v457 = vld [vmem:[%s4] sm:$0x1]
      %v459 = vlaneseq
      %v460 = vshrl.u32 %v459, 7
      %v461 = vsub.s32 0, %v460
      %v462 = vrot.slane %v457, %v461
      %vm464 = vcmask 523264
      %v466 = vsel %vm464, %v431, 0
      %v469 = vsel %vm464, %v436, 0
      %v472 = vsel %vm464, %v441, 0
      %v475 = vsel %vm464, %v446, 0
      %477 = vmatprep.subr.mxu0 0.0
      %478 = vmatpush1.msra.mxu0 %v449
      %479 = vmatprep.subr.mxu0 0.0
      %480 = vmatpush1.msra.mxu0 %v450
      %481 = vmatprep.subr.mxu0 0.0
      %482 = vmatpush1.msra.mxu0 %v451
      %483 = vmatprep.subr.mxu0 0.0
      %484 = vmatpush1.msra.mxu0 %v452
      %485 = vmatprep.subr.mxu0 0.0
      %486 = vmatpush1.msra.mxu0 %v453
      %487 = vmatprep.subr.mxu0 0.0
      %488 = vmatpush1.msra.mxu0 %v454
      %489 = vmatprep.subr.mxu0 0.0
      %490 = vmatpush1.msra.mxu0 %v455
      %491 = vmatprep.subr.mxu0 0.0
      %492 = vmatpush1.msra.mxu0 %v456
      %493 = vmatprep.subr.mxu0 0.0
      %494 = vmatpush1.msra.mxu0 0.0
      %495 = vmatprep.subr.mxu0 0.0
      %496 = vmatpush1.msra.mxu0 0.0
      %497 = vmatprep.subr.mxu0 0.0
      %498 = vmatpush1.msra.mxu0 0.0
      %499 = vmatprep.subr.mxu0 0.0
      %500 = vmatpush1.msra.mxu0 0.0
      %501 = vmatprep.subr.mxu0 0.0
      %502 = vmatpush1.msra.mxu0 0.0
      %503 = vmatprep.subr.mxu0 0.0
      %504 = vmatpush1.msra.mxu0 0.0
      %505 = vmatprep.subr.mxu0 0.0
      %506 = vmatpush1.msra.mxu0 0.0
      %507 = vmatprep.subr.mxu0 0.0
      %508 = vmatpush1.msra.mxu0 0.0
      %509 = vmatprep.subr.mxu0 0.0
      %510 = vmatpush1.msra.mxu0 0.0
      %511 = vmatprep.subr.mxu0 0.0
      %512 = vmatpush1.msra.mxu0 0.0
      %513 = vmatprep.subr.mxu0 0.0
      %514 = vmatpush1.msra.mxu0 0.0
      %515 = vmatprep.subr.mxu0 0.0
      %516 = vmatpush1.msra.mxu0 0.0
      %517 = vmatprep.subr.mxu0 0.0
      %518 = vmatpush1.msra.mxu0 0.0
      %519 = vmatprep.subr.mxu0 0.0
      %520 = vmatpush1.msra.mxu0 0.0
      %521 = vmatprep.subr.mxu0 0.0
      %522 = vmatpush1.msra.mxu0 0.0
      %523 = vmatprep.subr.mxu0 0.0
      %524 = vmatpush1.msra.mxu0 0.0
      %525 = vmatprep.subr.mxu0 0.0
      %526 = vmatpush1.msra.mxu0 0.0
      %527 = vmatprep.subr.mxu0 0.0
      %528 = vmatpush1.msra.mxu0 0.0
      %529 = vmatprep.subr.mxu0 0.0
      %530 = vmatpush1.msra.mxu0 0.0
      %531 = vmatprep.subr.mxu0 0.0
      %532 = vmatpush1.msra.mxu0 0.0
      %533 = vmatprep.subr.mxu0 0.0
      %534 = vmatpush1.msra.mxu0 0.0
      %535 = vmatprep.subr.mxu0 0.0
      %536 = vmatpush1.msra.mxu0 0.0
      %537 = vmatprep.subr.mxu0 0.0
      %538 = vmatpush1.msra.mxu0 0.0
      %539 = vmatprep.subr.mxu0 0.0
      %540 = vmatpush1.msra.mxu0 0.0
      %541 = vmatprep.mubr.f32.mxu0 0.0
      %542 = vmatmul.mubr.f32.gmra.mrb[0].mxu0 %v466
      %v543 = vpop.f32.mrb[0].mxu0
      %v544 = vadd.f32 %v462, %v543
      %v545 = vpop.f32.mrb[0].mxu0
      %546 = vmatprep.mubr.f32.mxu0 0.0
      %547 = vmatmul.mubr.f32.gmra.mrb[0].mxu0 %v469
      %v548 = vpop.f32.mrb[0].mxu0
      %v549 = vadd.f32 %v462, %v548
      %v550 = vpop.f32.mrb[0].mxu0
      %551 = vmatprep.mubr.f32.mxu0 0.0
      %552 = vmatmul.mubr.f32.gmra.mrb[0].mxu0 %v472
      %v553 = vpop.f32.mrb[0].mxu0
      %v554 = vadd.f32 %v462, %v553
      %v555 = vpop.f32.mrb[0].mxu0
      %556 = vmatprep.mubr.f32.mxu0 0.0
      %557 = vmatmul.mubr.f32.gmra.mrb[0].mxu0 %v475
      %v558 = vpop.f32.mrb[0].mxu0
      %v559 = vadd.f32 %v462, %v558
      %v560 = vpop.f32.mrb[0].mxu0
      %561 = vdwg.mxu0
      %v562 = vmax.f32 %v544, 0.0
      %v563 = vmax.f32 %v549, 0.0
      %v564 = vmax.f32 %v554, 0.0
      %v565 = vmax.f32 %v559, 0.0
      %v566 = vadd.f32 %v431, %v562
      %v567 = vadd.f32 %v436, %v563
      %v568 = vadd.f32 %v441, %v564
      %v569 = vadd.f32 %v446, %v565
      %v570 = vld [vmem:[%s5] sm:$0xff]
      %v571 = vld [vmem:[%s5 + $0x8] sm:$0xff]
      %v572 = vld [vmem:[%s5 + $0x10] sm:$0xff]
      %v573 = vld [vmem:[%s5 + $0x18] sm:$0xff]
      %v574 = vld [vmem:[%s5 + $0x20] sm:$0xff]
      %v575 = vld [vmem:[%s5 + $0x28] sm:$0xff]
      %v576 = vld [vmem:[%s5 + $0x30] sm:$0xff]
      %v577 = vld [vmem:[%s5 + $0x38] sm:$0xff]
      %v578 = vld [vmem:[%s6] sm:$0x1]
      %v580 = vlaneseq
      %v581 = vshrl.u32 %v580, 7
      %v582 = vsub.s32 0, %v581
      %v583 = vrot.slane %v578, %v582
      %v586 = vsel %vm464, %v566, 0
      %v589 = vsel %vm464, %v567, 0
      %v592 = vsel %vm464, %v568, 0
      %v595 = vsel %vm464, %v569, 0
      %597 = vmatprep.subr.mxu0 0.0
      %598 = vmatpush1.msra.mxu0 %v570
      %599 = vmatprep.subr.mxu0 0.0
      %600 = vmatpush1.msra.mxu0 %v571
      %601 = vmatprep.subr.mxu0 0.0
      %602 = vmatpush1.msra.mxu0 %v572
      %603 = vmatprep.subr.mxu0 0.0
      %604 = vmatpush1.msra.mxu0 %v573
      %605 = vmatprep.subr.mxu0 0.0
      %606 = vmatpush1.msra.mxu0 %v574
      %607 = vmatprep.subr.mxu0 0.0
      %608 = vmatpush1.msra.mxu0 %v575
      %609 = vmatprep.subr.mxu0 0.0
      %610 = vmatpush1.msra.mxu0 %v576
      %611 = vmatprep.subr.mxu0 0.0
      %612 = vmatpush1.msra.mxu0 %v577
      %613 = vmatprep.subr.mxu0 0.0
      %614 = vmatpush1.msra.mxu0 0.0
      %615 = vmatprep.subr.mxu0 0.0
      %616 = vmatpush1.msra.mxu0 0.0
      %617 = vmatprep.subr.mxu0 0.0
      %618 = vmatpush1.msra.mxu0 0.0
      %619 = vmatprep.subr.mxu0 0.0
      %620 = vmatpush1.msra.mxu0 0.0
      %621 = vmatprep.subr.mxu0 0.0
      %622 = vmatpush1.msra.mxu0 0.0
      %623 = vmatprep.subr.mxu0 0.0
      %624 = vmatpush1.msra.mxu0 0.0
      %625 = vmatprep.subr.mxu0 0.0
      %626 = vmatpush1.msra.mxu0 0.0
      %627 = vmatprep.subr.mxu0 0.0
      %628 = vmatpush1.msra.mxu0 0.0
      %629 = vmatprep.subr.mxu0 0.0
      %630 = vmatpush1.msra.mxu0 0.0
      %631 = vmatprep.subr.mxu0 0.0
      %632 = vmatpush1.msra.mxu0 0.0
      %633 = vmatprep.subr.mxu0 0.0
      %634 = vmatpush1.msra.mxu0 0.0
      %635 = vmatprep.subr.mxu0 0.0
      %636 = vmatpush1.msra.mxu0 0.0
      %637 = vmatprep.subr.mxu0 0.0
      %638 = vmatpush1.msra.mxu0 0.0
      %639 = vmatprep.subr.mxu0 0.0
      %640 = vmatpush1.msra.mxu0 0.0
      %641 = vmatprep.subr.mxu0 0.0
      %642 = vmatpush1.msra.mxu0 0.0
      %643 = vmatprep.subr.mxu0 0.0
      %644 = vmatpush1.msra.mxu0 0.0
      %645 = vmatprep.subr.mxu0 0.0
      %646 = vmatpush1.msra.mxu0 0.0
      %647 = vmatprep.subr.mxu0 0.0
      %648 = vmatpush1.msra.mxu0 0.0
      %649 = vmatprep.subr.mxu0 0.0
      %650 = vmatpush1.msra.mxu0 0.0
      %651 = vmatprep.subr.mxu0 0.0
      %652 = vmatpush1.msra.mxu0 0.0
      %653 = vmatprep.subr.mxu0 0.0
      %654 = vmatpush1.msra.mxu0 0.0
      %655 = vmatprep.subr.mxu0 0.0
      %656 = vmatpush1.msra.mxu0 0.0
      %657 = vmatprep.subr.mxu0 0.0
      %658 = vmatpush1.msra.mxu0 0.0
      %659 = vmatprep.subr.mxu0 0.0
      %660 = vmatpush1.msra.mxu0 0.0
      %661 = vmatprep.mubr.f32.mxu0 0.0
      %662 = vmatmul.mubr.f32.gmra.mrb[0].mxu0 %v586
      %v663 = vpop.f32.mrb[0].mxu0
      %v664 = vadd.f32 %v583, %v663
      %v665 = vpop.f32.mrb[0].mxu0
      %666 = vmatprep.mubr.f32.mxu0 0.0
      %667 = vmatmul.mubr.f32.gmra.mrb[0].mxu0 %v589
      %v668 = vpop.f32.mrb[0].mxu0
      %v669 = vadd.f32 %v583, %v668
      %v670 = vpop.f32.mrb[0].mxu0
      %671 = vmatprep.mubr.f32.mxu0 0.0
      %672 = vmatmul.mubr.f32.gmra.mrb[0].mxu0 %v592
      %v673 = vpop.f32.mrb[0].mxu0
      %v674 = vadd.f32 %v583, %v673
      %v675 = vpop.f32.mrb[0].mxu0
      %676 = vmatprep.mubr.f32.mxu0 0.0
      %677 = vmatmul.mubr.f32.gmra.mrb[0].mxu0 %v595
      %v678 = vpop.f32.mrb[0].mxu0
      %v679 = vadd.f32 %v583, %v678
      %v680 = vpop.f32.mrb[0].mxu0
      %681 = vdwg.mxu0
      %v682 = vmax.f32 %v664, 0.0
      %v683 = vmax.f32 %v669, 0.0
      %v684 = vmax.f32 %v674, 0.0
      %v685 = vmax.f32 %v679, 0.0
      %v686 = vadd.f32 %v566, %v682
      %v687 = vadd.f32 %v567, %v683
      %v688 = vadd.f32 %v568, %v684
      %v689 = vadd.f32 %v569, %v685
      %v690 = vld [vmem:[%s7] sm:$0xff]
      %v691 = vld [vmem:[%s7 + $0x8] sm:$0xff]
      %v692 = vld [vmem:[%s7 + $0x10] sm:$0xff]
      %v693 = vld [vmem:[%s7 + $0x18] sm:$0xff]
      %v694 = vld [vmem:[%s7 + $0x20] sm:$0xff]
      %v695 = vld [vmem:[%s7 + $0x28] sm:$0xff]
      %v696 = vld [vmem:[%s7 + $0x30] sm:$0xff]
      %v697 = vld [vmem:[%s7 + $0x38] sm:$0xff]
      %v698 = vld [vmem:[%s8] sm:$0x1]
      %v700 = vlaneseq
      %v701 = vshrl.u32 %v700, 7
      %v702 = vsub.s32 0, %v701
      %v703 = vrot.slane %v698, %v702
      %v706 = vsel %vm464, %v686, 0
      %v709 = vsel %vm464, %v687, 0
      %v712 = vsel %vm464, %v688, 0
      %v715 = vsel %vm464, %v689, 0
      %717 = vmatprep.subr.mxu0 0.0
      %718 = vmatpush1.msra.mxu0 %v690
      %719 = vmatprep.subr.mxu0 0.0
      %720 = vmatpush1.msra.mxu0 %v691
      %721 = vmatprep.subr.mxu0 0.0
      %722 = vmatpush1.msra.mxu0 %v692
      %723 = vmatprep.subr.mxu0 0.0
      %724 = vmatpush1.msra.mxu0 %v693
      %725 = vmatprep.subr.mxu0 0.0
      %726 = vmatpush1.msra.mxu0 %v694
      %727 = vmatprep.subr.mxu0 0.0
      %728 = vmatpush1.msra.mxu0 %v695
      %729 = vmatprep.subr.mxu0 0.0
      %730 = vmatpush1.msra.mxu0 %v696
      %731 = vmatprep.subr.mxu0 0.0
      %732 = vmatpush1.msra.mxu0 %v697
      %733 = vmatprep.subr.mxu0 0.0
      %734 = vmatpush1.msra.mxu0 0.0
      %735 = vmatprep.subr.mxu0 0.0
      %736 = vmatpush1.msra.mxu0 0.0
      %737 = vmatprep.subr.mxu0 0.0
      %738 = vmatpush1.msra.mxu0 0.0
      %739 = vmatprep.subr.mxu0 0.0
      %740 = vmatpush1.msra.mxu0 0.0
      %741 = vmatprep.subr.mxu0 0.0
      %742 = vmatpush1.msra.mxu0 0.0
      %743 = vmatprep.subr.mxu0 0.0
      %744 = vmatpush1.msra.mxu0 0.0
      %745 = vmatprep.subr.mxu0 0.0
      %746 = vmatpush1.msra.mxu0 0.0
      %747 = vmatprep.subr.mxu0 0.0
      %748 = vmatpush1.msra.mxu0 0.0
      %749 = vmatprep.subr.mxu0 0.0
      %750 = vmatpush1.msra.mxu0 0.0
      %751 = vmatprep.subr.mxu0 0.0
      %752 = vmatpush1.msra.mxu0 0.0
      %753 = vmatprep.subr.mxu0 0.0
      %754 = vmatpush1.msra.mxu0 0.0
      %755 = vmatprep.subr.mxu0 0.0
      %756 = vmatpush1.msra.mxu0 0.0
      %757 = vmatprep.subr.mxu0 0.0
      %758 = vmatpush1.msra.mxu0 0.0
      %759 = vmatprep.subr.mxu0 0.0
      %760 = vmatpush1.msra.mxu0 0.0
      %761 = vmatprep.subr.mxu0 0.0
      %762 = vmatpush1.msra.mxu0 0.0
      %763 = vmatprep.subr.mxu0 0.0
      %764 = vmatpush1.msra.mxu0 0.0
      %765 = vmatprep.subr.mxu0 0.0
      %766 = vmatpush1.msra.mxu0 0.0
      %767 = vmatprep.subr.mxu0 0.0
      %768 = vmatpush1.msra.mxu0 0.0
      %769 = vmatprep.subr.mxu0 0.0
      %770 = vmatpush1.msra.mxu0 0.0
      %771 = vmatprep.subr.mxu0 0.0
      %772 = vmatpush1.msra.mxu0 0.0
      %773 = vmatprep.subr.mxu0 0.0
      %774 = vmatpush1.msra.mxu0 0.0
      %775 = vmatprep.subr.mxu0 0.0
      %776 = vmatpush1.msra.mxu0 0.0
      %777 = vmatprep.subr.mxu0 0.0
      %778 = vmatpush1.msra.mxu0 0.0
      %779 = vmatprep.subr.mxu0 0.0
      %780 = vmatpush1.msra.mxu0 0.0
      %781 = vmatprep.mubr.f32.mxu0 0.0
      %782 = vmatmul.mubr.f32.gmra.mrb[0].mxu0 %v706
      %v783 = vpop.f32.mrb[0].mxu0
      %v784 = vadd.f32 %v703, %v783
      %v785 = vpop.f32.mrb[0].mxu0
      %786 = vmatprep.mubr.f32.mxu0 0.0
      %787 = vmatmul.mubr.f32.gmra.mrb[0].mxu0 %v709
      %v788 = vpop.f32.mrb[0].mxu0
      %v789 = vadd.f32 %v703, %v788
      %v790 = vpop.f32.mrb[0].mxu0
      %791 = vmatprep.mubr.f32.mxu0 0.0
      %792 = vmatmul.mubr.f32.gmra.mrb[0].mxu0 %v712
      %v793 = vpop.f32.mrb[0].mxu0
      %v794 = vadd.f32 %v703, %v793
      %v795 = vpop.f32.mrb[0].mxu0
      %796 = vmatprep.mubr.f32.mxu0 0.0
      %797 = vmatmul.mubr.f32.gmra.mrb[0].mxu0 %v715
      %v798 = vpop.f32.mrb[0].mxu0
      %v799 = vadd.f32 %v703, %v798
      %v800 = vpop.f32.mrb[0].mxu0
      %801 = vdwg.mxu0
      %v802 = vmax.f32 %v784, 0.0
      %v803 = vmax.f32 %v789, 0.0
      %v804 = vmax.f32 %v794, 0.0
      %v805 = vmax.f32 %v799, 0.0
      %806 = vst.msk [vmem:[%s334] sm:$0xff] %vm351, %v802
      %807 = vst.msk [vmem:[%s334 + $0x8] sm:$0xff] %vm351, %v803
      %808 = vst.msk [vmem:[%s334 + $0x10] sm:$0xff] %vm351, %v804
      %809 = vst.msk [vmem:[%s334 + $0x18] sm:$0xff] %vm351, %v805
      %s810 = smul.u32 4, %s20
      %p811 = scmp.lt.s32.totalorder %s810, 7
      %s812 = scalar_select %p811, %s810, 7
      %s813 = smul.addr %s812, 8
      %s814 = scalar_lea.vmem %s9, %s813
      // Predicated region
      $region57: #{tpu_custom_call.1} parent=55 // pred_check
        %p815 = pneg %p232
      $region58: #{tpu_custom_call.1} parent=55 // pred_check_branch
        %817 = sbr.rel (%p815) target = $region60
      $region59: #{tpu_custom_call.1} parent=55 // pred_region
        %s818 = smul.u32 4, %s20
      $region60: #{tpu_custom_call.1} parent=55 // pred_fallthru
        _
    $region56: #{tpu_custom_call.1} parent=5 // pred_fallthru
      _
    %p819 = scmp.le.s32.totalorder 2, %s15
    // Predicated region
    $region61: #{tpu_custom_call.1} parent=5 // pred_check
      %p820 = pneg %p819
    $region62: #{tpu_custom_call.1} parent=5 // pred_check_branch
      %822 = sbr.rel (%p820) target = $region64
    $region63: #{tpu_custom_call.1} parent=5 // pred_region
      %s823 = ssub.s32 %s15, 2
      // Predicated region
      $region65: #{tpu_custom_call.1} parent=63 // pred_check
        %p824 = pneg %p238
      $region66: #{tpu_custom_call.1} parent=63 // pred_check_branch
        %826 = sbr.rel (%p824) target = $region68
      $region67: #{tpu_custom_call.1} parent=63 // pred_region
        %s827 = smul.u32 4, %s21
        %p828 = scmp.lt.s32.totalorder %s827, 7
        %s829 = scalar_select %p828, %s827, 7
        %s830 = smul.addr %s829, 8
        %s831 = scalar_lea.vmem %s9, %s830
      $region68: #{tpu_custom_call.1} parent=63 // pred_fallthru
        _
    $region64: #{tpu_custom_call.1} parent=5 // pred_fallthru
      _
  $region6: #{tpu_custom_call.1} parent=0 // loop_footer
    %s19 = sadd.s32 1, %s15
  $region7: #{tpu_custom_call.1} parent=0 // loop_footer_branch
    %14 = sbr.rel target = $region3
  $region8: #{tpu_custom_call.1} parent=0 // loop_exit
    _

</llo_original>
